<compile_context>
chip_gen: v6e
topology: v6e:2x2x1
jax: 0.10.0
libtpu: 0.0.40
codegen_flags: <defaults>
</compile_context>

<pallas_src>
import functools

import jax
import jax.numpy as jnp
import numpy as np
from jax.experimental import pallas as pl
from jax.experimental.pallas import tpu as pltpu

EMBED_DIM = 300  # hard-coded inside ModelCNN.__init__


def _textcnn_fused_kernel(x_ref, w_ref, b_ref, o_ref, *, sizes, K, L,
                          compute_dtype):
    """Fused TextCNN forward (all kernel sizes) for one batch tile.

    x_ref: (Bt, L, E)              f32 embeddings (cast to bf16 in-kernel)
    w_ref: (E, sum(sizes)*K)       bf16 packed weights, one (E, K) column
                                   group per (kernel_size, tap)
    b_ref: (1, len(sizes)*K)       f32 biases, one K-group per kernel size
    o_ref: (Bt, len(sizes)*K)      f32 output: max_t relu(conv_s(x)) per size
    """
    Bt = x_ref.shape[0]
    E = x_ref.shape[2]

    # In-kernel cast (VALU, hidden under DMA) + one lane-dense MXU matmul over
    # all rows and all taps of all kernel sizes.
    x2 = x_ref[...].astype(compute_dtype).reshape(Bt * L, E)
    y = jnp.dot(x2, w_ref[...], preferred_element_type=jnp.float32)
    y = y.reshape(Bt, L, -1)                       # (Bt, L, total_taps*K)

    b = b_ref[...]                                 # (1, len(sizes)*K) f32

    outs = []
    col = 0
    for si, s in enumerate(sizes):                 # static, unrolled
        T = L - s + 1                              # valid conv output length
        acc = jnp.zeros((Bt, T, K), jnp.float32)
        for tap in range(s):                       # shift-add 8-wide results
            c0 = (col + tap) * K
            acc = acc + y[:, tap:tap + T, c0:c0 + K]
        col += s
        acc = acc + b[:, si * K:(si + 1) * K][:, None, :]   # conv bias
        acc = jnp.maximum(acc, 0.0)                # F.relu
        outs.append(jnp.max(acc, axis=1))          # global max-pool over time
    o_ref[...] = jnp.concatenate(outs, axis=1).astype(o_ref.dtype)


def textcnn_forward(x, weights, biases, kernel_sizes, *, b_tile=512,
                    compute_dtype=jnp.bfloat16):
    """x: (B, L, E) float32. weights[i]: (K, 1, size_i, E). biases[i]: (K,)."""
    B, L, E = x.shape
    sizes = tuple(int(s) for s in kernel_sizes)
    K = weights[0].shape[0]
    ns = len(sizes)
    total_taps = sum(sizes)
    assert L >= max(sizes), "sequence length must be >= max kernel size"

    # Pack every (size, tap) into K contiguous RHS columns: (E, sum(sizes)*K).
    # Weights are tiny (~tens of KB), so host-side packing/cast is free.
    w_cols = []
    for s, w in zip(sizes, weights):
        for tap in range(s):
            w_cols.append(jnp.transpose(w[:, 0, tap, :], (1, 0)))  # (E, K)
    w_packed = jnp.concatenate(w_cols, axis=1).astype(compute_dtype)

    b_packed = jnp.concatenate(list(biases), axis=0).reshape(1, ns * K)
    b_packed = b_packed.astype(jnp.float32)

    # Batch tiling.  No explicit batch padding: the ragged last tile is handled
    # by Pallas (OOB reads padded, OOB writes masked); rows are independent.
    if B > b_tile:
        bt = b_tile
    elif B >= 16:
        # Guarantee >=2 grid steps so the "parallel" batch axis can shard
        # across both v7x TensorCores (tile rounded up to a sublane multiple).
        bt = ((pl.cdiv(B, 2) + 7) // 8) * 8
    else:
        bt = B                                     # tiny batch: one full tile
    grid = (pl.cdiv(B, bt),)

    kernel = functools.partial(_textcnn_fused_kernel, sizes=sizes, K=K, L=L,
                               compute_dtype=compute_dtype)
    out = pl.pallas_call(
        kernel,
        out_shape=jax.ShapeDtypeStruct((B, ns * K), jnp.float32),
        grid=grid,
        in_specs=[
            # E=300 / L equal the full array dims -> legal block shape; x is
            # read from HBM exactly once, as raw f32, by the kernel pipeline.
            pl.BlockSpec((bt, L, E), lambda i: (i, 0, 0)),
            pl.BlockSpec((E, total_taps * K), lambda i: (0, 0)),
            pl.BlockSpec((1, ns * K), lambda i: (0, 0)),
        ],
        out_specs=pl.BlockSpec((bt, ns * K), lambda i: (i, 0)),
        compiler_params=pltpu.CompilerParams(
            dimension_semantics=("parallel",),      # megacore over batch tiles
            # 48 MiB: enough for bt=512 double-buffered f32 x-tiles (~20 MiB)
            # + f32 intermediates, with headroom inside v7x's 64 MiB VMEM.
            vmem_limit_bytes=48 * 1024 * 1024,
        ),
    )(x, w_packed, b_packed)
    return out


def textcnn_reference(x, weights, biases, kernel_sizes):
    """Pure-JAX f32 reference of the PyTorch forward."""
    outs = []
    for size, w, b in zip(kernel_sizes, weights, biases):
        T = x.shape[1] - size + 1
        conv = jnp.zeros((x.shape[0], T, w.shape[0]), jnp.float32)
        for s in range(size):
            conv = conv + jnp.einsum("bte,ke->btk", x[:, s:s + T, :], w[:, 0, s, :])
        conv = jax.nn.relu(conv + b[None, None, :])
        outs.append(jnp.max(conv, axis=1))
    return jnp.concatenate(outs, axis=1)


def init_params(key, kernel_num, kernel_sizes, embed_dim):
    """Deterministic init mimicking PyTorch Conv2d defaults (uniform +-1/sqrt(fan_in))."""
    weights, biases = [], []
    for size in kernel_sizes:
        key, kw, kb = jax.random.split(key, 3)
        fan_in = 1 * size * embed_dim
        bound = 1.0 / np.sqrt(fan_in)
        w = jax.random.uniform(
            kw, (kernel_num, 1, size, embed_dim), jnp.float32, -bound, bound
        )
        b = jax.random.uniform(kb, (kernel_num,), jnp.float32, -bound, bound)
        weights.append(w)
        biases.append(b)
    return weights, biases


if __name__ == "__main__":
    # Small, module-consistent shapes: max_len=16, embed_dim=300 (fixed in
    # __init__), kernel_num=8, kernel_sizes=(3, 4, 5).
    max_len = 16
    kernel_num = 8
    kernel_sizes = (3, 4, 5)

    key = jax.random.PRNGKey(0)
    key, kx1, kx2 = jax.random.split(key, 3)
    weights, biases = init_params(key, kernel_num, kernel_sizes, EMBED_DIM)

    # Case 1: tiny batch (single tile).
    x1 = jax.random.normal(kx1, (2, max_len, EMBED_DIM), jnp.float32)
    out1 = jax.block_until_ready(textcnn_forward(x1, weights, biases, kernel_sizes))
    ref1 = textcnn_reference(x1, weights, biases, kernel_sizes)
    assert out1.shape == (2, kernel_num * len(kernel_sizes)), out1.shape
    # bf16 matmul inputs with f32 accumulation -> loosened tolerance vs f32 ref.
    np.testing.assert_allclose(np.asarray(out1), np.asarray(ref1),
                               rtol=2e-2, atol=2e-2)

    # Case 2: batch not divisible by the tile -> exercises the ragged last
    # grid step (masked OOB writes, no explicit batch padding).
    x2 = jax.random.normal(kx2, (20, max_len, EMBED_DIM), jnp.float32)
    out2 = jax.block_until_ready(textcnn_forward(x2, weights, biases, kernel_sizes))
    ref2 = textcnn_reference(x2, weights, biases, kernel_sizes)
    assert out2.shape == (20, kernel_num * len(kernel_sizes)), out2.shape
    np.testing.assert_allclose(np.asarray(out2), np.asarray(ref2),
                               rtol=2e-2, atol=2e-2)

    print("KERNEL_OK")
</pallas_src>

<mosaic_0001>
module attributes {stable_mosaic.version = 11 : i64} {
  func.func @_textcnn_fused_kernel(%arg0: i32, %arg1: memref<2x16x300xf32, #tpu.memory_space<vmem>>, %arg2: memref<300x96xbf16, #tpu.memory_space<vmem>>, %arg3: memref<1x24xf32, #tpu.memory_space<vmem>>, %arg4: memref<2x24xf32, #tpu.memory_space<vmem>>) attributes {dimension_semantics = [#tpu.dimension_semantics<parallel>], iteration_bounds = array<i64: 1>, scalar_prefetch = 0 : i64, scratch_operands = 0 : i64, tpu.core_type = #tpu.core_type<tc>, window_params = [{transform_indices = @transform_0, window_bounds = array<i64: 2, 16, 300>}, {pipeline_mode = #tpu.pipeline_mode<synchronous>, transform_indices = @transform_1, window_bounds = array<i64: 300, 96>}, {pipeline_mode = #tpu.pipeline_mode<synchronous>, transform_indices = @transform_2, window_bounds = array<i64: 1, 24>}, {transform_indices = @transform_3, window_bounds = array<i64: 2, 24>}]} {
    %c0 = arith.constant 0 : index
    %c0_0 = arith.constant 0 : index
    %c0_1 = arith.constant 0 : index
    %0 = vector.load %arg1[%c0, %c0_0, %c0_1] : memref<2x16x300xf32, #tpu.memory_space<vmem>>, vector<2x16x300xf32>
    %1 = arith.truncf %0 : vector<2x16x300xf32> to vector<2x16x300xbf16>
    %2 = vector.shape_cast %1 : vector<2x16x300xbf16> to vector<32x300xbf16>
    %c0_2 = arith.constant 0 : index
    %c0_3 = arith.constant 0 : index
    %3 = vector.load %arg2[%c0_2, %c0_3] : memref<300x96xbf16, #tpu.memory_space<vmem>>, vector<300x96xbf16>
    %cst = arith.constant dense<0.000000e+00> : vector<32x96xf32>
    %4 = tpu.matmul %2, %3, %cst {dimension_numbers = #tpu.dot_dimension_numbers<[1], [0], [0], [1], [0, 0, 1, 1], [], []>} : vector<32x300xbf16>, vector<300x96xbf16>, vector<32x96xf32> -> vector<32x96xf32>
    %5 = vector.shape_cast %4 : vector<32x96xf32> to vector<2x16x96xf32>
    %c0_4 = arith.constant 0 : index
    %c0_5 = arith.constant 0 : index
    %6 = vector.load %arg3[%c0_4, %c0_5] : memref<1x24xf32, #tpu.memory_space<vmem>>, vector<1x24xf32>
    %cst_6 = arith.constant 0.000000e+00 : f32
    %7 = vector.broadcast %cst_6 : f32 to vector<2x14x8xf32>
    %8 = vector.extract_strided_slice %5 {offsets = [0, 0, 0], sizes = [2, 14, 8], strides = [1, 1, 1]} : vector<2x16x96xf32> to vector<2x14x8xf32>
    %9 = arith.addf %7, %8 : vector<2x14x8xf32>
    %10 = vector.extract_strided_slice %5 {offsets = [0, 1, 8], sizes = [2, 14, 8], strides = [1, 1, 1]} : vector<2x16x96xf32> to vector<2x14x8xf32>
    %11 = arith.addf %9, %10 : vector<2x14x8xf32>
    %12 = vector.extract_strided_slice %5 {offsets = [0, 2, 16], sizes = [2, 14, 8], strides = [1, 1, 1]} : vector<2x16x96xf32> to vector<2x14x8xf32>
    %13 = arith.addf %11, %12 : vector<2x14x8xf32>
    %14 = vector.extract_strided_slice %6 {offsets = [0, 0], sizes = [1, 8], strides = [1, 1]} : vector<1x24xf32> to vector<1x8xf32>
    %15 = vector.shape_cast %14 : vector<1x8xf32> to vector<1x1x8xf32>
    %16 = vector.broadcast %15 : vector<1x1x8xf32> to vector<2x14x8xf32>
    %17 = arith.addf %13, %16 : vector<2x14x8xf32>
    %cst_7 = arith.constant 0.000000e+00 : f32
    %18 = vector.broadcast %cst_7 : f32 to vector<2x14x8xf32>
    %19 = arith.maximumf %17, %18 : vector<2x14x8xf32>
    %cst_8 = arith.constant dense<0xFF800000> : vector<2x8xf32>
    %20 = vector.multi_reduction <maximumf>, %19, %cst_8 [1] : vector<2x14x8xf32> to vector<2x8xf32>
    %cst_9 = arith.constant 0.000000e+00 : f32
    %21 = vector.broadcast %cst_9 : f32 to vector<2x13x8xf32>
    %22 = vector.extract_strided_slice %5 {offsets = [0, 0, 24], sizes = [2, 13, 8], strides = [1, 1, 1]} : vector<2x16x96xf32> to vector<2x13x8xf32>
    %23 = arith.addf %21, %22 : vector<2x13x8xf32>
    %24 = vector.extract_strided_slice %5 {offsets = [0, 1, 32], sizes = [2, 13, 8], strides = [1, 1, 1]} : vector<2x16x96xf32> to vector<2x13x8xf32>
    %25 = arith.addf %23, %24 : vector<2x13x8xf32>
    %26 = vector.extract_strided_slice %5 {offsets = [0, 2, 40], sizes = [2, 13, 8], strides = [1, 1, 1]} : vector<2x16x96xf32> to vector<2x13x8xf32>
    %27 = arith.addf %25, %26 : vector<2x13x8xf32>
    %28 = vector.extract_strided_slice %5 {offsets = [0, 3, 48], sizes = [2, 13, 8], strides = [1, 1, 1]} : vector<2x16x96xf32> to vector<2x13x8xf32>
    %29 = arith.addf %27, %28 : vector<2x13x8xf32>
    %30 = vector.extract_strided_slice %6 {offsets = [0, 8], sizes = [1, 8], strides = [1, 1]} : vector<1x24xf32> to vector<1x8xf32>
    %31 = vector.shape_cast %30 : vector<1x8xf32> to vector<1x1x8xf32>
    %32 = vector.broadcast %31 : vector<1x1x8xf32> to vector<2x13x8xf32>
    %33 = arith.addf %29, %32 : vector<2x13x8xf32>
    %cst_10 = arith.constant 0.000000e+00 : f32
    %34 = vector.broadcast %cst_10 : f32 to vector<2x13x8xf32>
    %35 = arith.maximumf %33, %34 : vector<2x13x8xf32>
    %cst_11 = arith.constant dense<0xFF800000> : vector<2x8xf32>
    %36 = vector.multi_reduction <maximumf>, %35, %cst_11 [1] : vector<2x13x8xf32> to vector<2x8xf32>
    %cst_12 = arith.constant 0.000000e+00 : f32
    %37 = vector.broadcast %cst_12 : f32 to vector<2x12x8xf32>
    %38 = vector.extract_strided_slice %5 {offsets = [0, 0, 56], sizes = [2, 12, 8], strides = [1, 1, 1]} : vector<2x16x96xf32> to vector<2x12x8xf32>
    %39 = arith.addf %37, %38 : vector<2x12x8xf32>
    %40 = vector.extract_strided_slice %5 {offsets = [0, 1, 64], sizes = [2, 12, 8], strides = [1, 1, 1]} : vector<2x16x96xf32> to vector<2x12x8xf32>
    %41 = arith.addf %39, %40 : vector<2x12x8xf32>
    %42 = vector.extract_strided_slice %5 {offsets = [0, 2, 72], sizes = [2, 12, 8], strides = [1, 1, 1]} : vector<2x16x96xf32> to vector<2x12x8xf32>
    %43 = arith.addf %41, %42 : vector<2x12x8xf32>
    %44 = vector.extract_strided_slice %5 {offsets = [0, 3, 80], sizes = [2, 12, 8], strides = [1, 1, 1]} : vector<2x16x96xf32> to vector<2x12x8xf32>
    %45 = arith.addf %43, %44 : vector<2x12x8xf32>
    %46 = vector.extract_strided_slice %5 {offsets = [0, 4, 88], sizes = [2, 12, 8], strides = [1, 1, 1]} : vector<2x16x96xf32> to vector<2x12x8xf32>
    %47 = arith.addf %45, %46 : vector<2x12x8xf32>
    %48 = vector.extract_strided_slice %6 {offsets = [0, 16], sizes = [1, 8], strides = [1, 1]} : vector<1x24xf32> to vector<1x8xf32>
    %49 = vector.shape_cast %48 : vector<1x8xf32> to vector<1x1x8xf32>
    %50 = vector.broadcast %49 : vector<1x1x8xf32> to vector<2x12x8xf32>
    %51 = arith.addf %47, %50 : vector<2x12x8xf32>
    %cst_13 = arith.constant 0.000000e+00 : f32
    %52 = vector.broadcast %cst_13 : f32 to vector<2x12x8xf32>
    %53 = arith.maximumf %51, %52 : vector<2x12x8xf32>
    %cst_14 = arith.constant dense<0xFF800000> : vector<2x8xf32>
    %54 = vector.multi_reduction <maximumf>, %53, %cst_14 [1] : vector<2x12x8xf32> to vector<2x8xf32>
    %55 = tpu.concatenate %20, %36, %54 in 1 : vector<2x8xf32>, vector<2x8xf32>, vector<2x8xf32> -> vector<2x24xf32>
    %c0_15 = arith.constant 0 : index
    %c0_16 = arith.constant 0 : index
    %56 = vector.load %arg4[%c0_15, %c0_16] : memref<2x24xf32, #tpu.memory_space<vmem>>, vector<2x24xf32>
    tpu.vector_store %arg4[%c0_15, %c0_16], %55 {strides = array<i32>} : memref<2x24xf32, #tpu.memory_space<vmem>>, vector<2x24xf32>,
    return
  }
  func.func @transform_0(%arg0: i32) -> (i32, i32, i32) {
    %c0_i32 = arith.constant 0 : i32
    %c0_i32_0 = arith.constant 0 : i32
    %c0_i32_1 = arith.constant 0 : i32
    return %arg0, %c0_i32, %c0_i32_0 : i32, i32, i32
  }
  func.func @transform_1(%arg0: i32) -> (i32, i32) {
    %c0_i32 = arith.constant 0 : i32
    %c0_i32_0 = arith.constant 0 : i32
    %c0_i32_1 = arith.constant 0 : i32
    return %c0_i32, %c0_i32_0 : i32, i32
  }
  func.func @transform_2(%arg0: i32) -> (i32, i32) {
    %c0_i32 = arith.constant 0 : i32
    %c0_i32_0 = arith.constant 0 : i32
    %c0_i32_1 = arith.constant 0 : i32
    return %c0_i32, %c0_i32_0 : i32, i32
  }
  func.func @transform_3(%arg0: i32) -> (i32, i32) {
    %c0_i32 = arith.constant 0 : i32
    %c0_i32_0 = arith.constant 0 : i32
    return %arg0, %c0_i32 : i32, i32
  }
}

</mosaic_0001>

<llo_original>
// kernel: tpu_custom_call.1
$region0: #{tpu_custom_call.1}
  #allocation0 [shape = 'u32[]', space=smem, size = 0x4, offset = 0x4, fixed_abs, tag = 'smem constant byte address 0x4 - core index']
  #allocation1 [shape = 'u32[144,128]{1,0:T(1,128)}', space=vmem, size = 0x12000, scoped, tag = 'internal scratch']
  %s0 = inlined_call_operand.vmem [shape: f32[2,16,300], index: 0, kind: input, shape index: {}]
  %s1 = inlined_call_operand.vmem [shape: bf16[300,96], index: 1, kind: input, shape index: {}]
  %s2 = inlined_call_operand.vmem [shape: f32[1,24], index: 2, kind: input, shape index: {}]
  %s3 = inlined_call_operand.hbm [shape: f32[2,24], index: 3, kind: output, shape index: {}]
  %s4 = sld [smem:[#allocation0]]
  $region22: #{tpu_custom_call.1} parent=0
    _
  %s6 = ssub.s32 1, %s4
  %s7 = scalar_select 0, %s6, %s4
  $region1: #{tpu_custom_call.1} parent=0
    #allocation2 [shape = 'u8[1024]{0}', space=vmem, size = 0x400, scoped, tag = 'output window, operand 0, single buffered']
    #allocation3 [shape = 's32[1]{0}', space=sflag, size = 0x4, scoped, tag = 'scoped memory for tpu_custom_call.1']
    %8 = vsyncpa [#allocation3], 0
    // Predicated region
    $region2: #{tpu_custom_call.1} parent=1 // pred_check
      _
    $region3: #{tpu_custom_call.1} parent=1 // pred_check_branch
      %10 = sbr.rel (0) target = $region5
    $region4: #{tpu_custom_call.1} parent=1 // pred_region
      _
    $region5: #{tpu_custom_call.1} parent=1 // pred_fallthru
      _
    // Predicated region
    $region6: #{tpu_custom_call.1} parent=1 // pred_check
      _
    $region7: #{tpu_custom_call.1} parent=1 // pred_check_branch
      %12 = sbr.rel (0) target = $region9
    $region8: #{tpu_custom_call.1} parent=1 // pred_region
      _
    $region9: #{tpu_custom_call.1} parent=1 // pred_fallthru
      _
    // Predicated region
    $region10: #{tpu_custom_call.1} parent=1 // pred_check
      _
    $region11: #{tpu_custom_call.1} parent=1 // pred_check_branch
      %14 = sbr.rel (0) target = $region13
    $region12: #{tpu_custom_call.1} parent=1 // pred_region
      _
    $region13: #{tpu_custom_call.1} parent=1 // pred_fallthru
      _
    %v16 = vld [vmem:[%s0] sm:$0xff]
    %v17 = vld [vmem:[%s0 + $0x8] sm:$0xff]
    %v18 = vld [vmem:[%s0 + $0x10] sm:$0xff]
    %v19 = vld [vmem:[%s0 + $0x18] sm:$0xff]
    %v20 = vld [vmem:[%s0 + $0x20] sm:$0xff]
    %v21 = vld [vmem:[%s0 + $0x28] sm:$0xff]
    %v22 = vld [vmem:[%s0 + $0x30] sm:$0xff]
    %v23 = vld [vmem:[%s0 + $0x38] sm:$0xff]
    %v24 = vld [vmem:[%s0 + $0x40] sm:$0xff]
    %v25 = vld [vmem:[%s0 + $0x48] sm:$0xff]
    %v26 = vld [vmem:[%s0 + $0x50] sm:$0xff]
    %v27 = vld [vmem:[%s0 + $0x58] sm:$0xff]
    %v28 = vpack.c.bf16 %v19, %v16
    %v29 = vpack.c.bf16 %v20, %v17
    %v30 = vpack.c.bf16 %v21, %v18
    %v31 = vpack.c.bf16 %v25, %v22
    %v32 = vpack.c.bf16 %v26, %v23
    %v33 = vpack.c.bf16 %v27, %v24
    %v34 = vld [vmem:[%s1] sm:$0xf]
    %v35 = vld [vmem:[%s1 + $0x4] sm:$0xf]
    %v36 = vld [vmem:[%s1 + $0x8] sm:$0xf]
    %v37 = vld [vmem:[%s1 + $0xc] sm:$0xf]
    %v38 = vld [vmem:[%s1 + $0x10] sm:$0xf]
    %v39 = vld [vmem:[%s1 + $0x14] sm:$0xf]
    %v40 = vld [vmem:[%s1 + $0x18] sm:$0xf]
    %v41 = vld [vmem:[%s1 + $0x1c] sm:$0xf]
    %v42 = vld [vmem:[%s1 + $0x20] sm:$0xf]
    %v43 = vld [vmem:[%s1 + $0x24] sm:$0xf]
    %v44 = vld [vmem:[%s1 + $0x28] sm:$0xf]
    %v45 = vld [vmem:[%s1 + $0x2c] sm:$0xf]
    %v46 = vld [vmem:[%s1 + $0x30] sm:$0xf]
    %v47 = vld [vmem:[%s1 + $0x34] sm:$0xf]
    %v48 = vld [vmem:[%s1 + $0x38] sm:$0xf]
    %v49 = vld [vmem:[%s1 + $0x3c] sm:$0xf]
    %v50 = vld [vmem:[%s1 + $0x40] sm:$0xf]
    %v51 = vld [vmem:[%s1 + $0x44] sm:$0xf]
    %v52 = vld [vmem:[%s1 + $0x48] sm:$0xf]
    %v53 = vld [vmem:[%s1 + $0x4c] sm:$0xf]
    %v54 = vld [vmem:[%s1 + $0x50] sm:$0xf]
    %v55 = vld [vmem:[%s1 + $0x54] sm:$0xf]
    %v56 = vld [vmem:[%s1 + $0x58] sm:$0xf]
    %v57 = vld [vmem:[%s1 + $0x5c] sm:$0xf]
    %v58 = vld [vmem:[%s1 + $0x60] sm:$0xf]
    %v59 = vld [vmem:[%s1 + $0x64] sm:$0xf]
    %v60 = vld [vmem:[%s1 + $0x68] sm:$0xf]
    %v61 = vld [vmem:[%s1 + $0x6c] sm:$0xf]
    %v62 = vld [vmem:[%s1 + $0x70] sm:$0xf]
    %v63 = vld [vmem:[%s1 + $0x74] sm:$0xf]
    %v64 = vld [vmem:[%s1 + $0x78] sm:$0xf]
    %v65 = vld [vmem:[%s1 + $0x7c] sm:$0xf]
    %v66 = vld [vmem:[%s1 + $0x80] sm:$0xf]
    %v67 = vld [vmem:[%s1 + $0x84] sm:$0xf]
    %v68 = vld [vmem:[%s1 + $0x88] sm:$0xf]
    %v69 = vld [vmem:[%s1 + $0x8c] sm:$0xf]
    %v70 = vld [vmem:[%s1 + $0x90] sm:$0xf]
    %v71 = vld [vmem:[%s1 + $0x94] sm:$0x3]
    %v110 = vunpack.c.l.b16 %v34
    %v111 = vunpack.c.l.b16 %v35
    %v112 = vunpack.c.l.b16 %v36
    %v113 = vunpack.c.l.b16 %v37
    %v114 = vunpack.c.l.b16 %v38
    %v115 = vunpack.c.l.b16 %v39
    %v116 = vunpack.c.l.b16 %v40
    %v117 = vunpack.c.l.b16 %v41
    %v118 = vunpack.c.l.b16 %v42
    %v119 = vunpack.c.l.b16 %v43
    %v120 = vunpack.c.l.b16 %v44
    %v121 = vunpack.c.l.b16 %v45
    %v122 = vunpack.c.l.b16 %v46
    %v123 = vunpack.c.l.b16 %v47
    %v124 = vunpack.c.l.b16 %v48
    %v125 = vunpack.c.l.b16 %v49
    %v126 = vunpack.c.l.b16 %v50
    %v127 = vunpack.c.l.b16 %v51
    %v128 = vunpack.c.l.b16 %v52
    %v129 = vunpack.c.l.b16 %v53
    %v130 = vunpack.c.l.b16 %v54
    %v131 = vunpack.c.l.b16 %v55
    %v132 = vunpack.c.l.b16 %v56
    %v133 = vunpack.c.l.b16 %v57
    %v134 = vunpack.c.l.b16 %v58
    %v135 = vunpack.c.l.b16 %v59
    %v136 = vunpack.c.l.b16 %v60
    %v137 = vunpack.c.l.b16 %v61
    %v138 = vunpack.c.l.b16 %v62
    %v139 = vunpack.c.l.b16 %v63
    %v140 = vunpack.c.l.b16 %v64
    %v141 = vunpack.c.l.b16 %v65
    %v142 = vunpack.c.l.b16 %v66
    %v143 = vunpack.c.l.b16 %v67
    %v144 = vunpack.c.l.b16 %v68
    %v145 = vunpack.c.l.b16 %v69
    %v146 = vunpack.c.l.b16 %v70
    %v147 = vunpack.c.l.b16 %v71
    %v148 = vpack.c.b16 %v111, %v110
    %v149 = vpack.c.b16 %v113, %v112
    %v150 = vpack.c.b16 %v115, %v114
    %v151 = vpack.c.b16 %v117, %v116
    %v152 = vpack.c.b16 %v119, %v118
    %v153 = vpack.c.b16 %v121, %v120
    %v154 = vpack.c.b16 %v123, %v122
    %v155 = vpack.c.b16 %v125, %v124
    %v156 = vpack.c.b16 %v127, %v126
    %v157 = vpack.c.b16 %v129, %v128
    %v158 = vpack.c.b16 %v131, %v130
    %v159 = vpack.c.b16 %v133, %v132
    %v160 = vpack.c.b16 %v135, %v134
    %v161 = vpack.c.b16 %v137, %v136
    %v162 = vpack.c.b16 %v139, %v138
    %v163 = vpack.c.b16 %v141, %v140
    %v164 = vpack.c.b16 %v143, %v142
    %v165 = vpack.c.b16 %v145, %v144
    %v166 = vpack.c.b16 %v147, %v146
    %vm185 = vcmask 359424
    %v187 = vsel %vm185, %v30, 0
    %v190 = vsel %vm185, %v33, 0
    %vm192 = vcmask 1045504
    %v194 = vsel %vm192, %v166, 0
    %196 = vmatprep.subr.bf16.mxu0 0
    %197 = vmatpush1.bf16.msra.mxu0 %v155
    %198 = vmatprep.subr.bf16.mxu0 0
    %199 = vmatpush1.bf16.msra.mxu0 %v154
    %200 = vmatprep.subr.bf16.mxu0 0
    %201 = vmatpush1.bf16.msra.mxu0 %v153
    %202 = vmatprep.subr.bf16.mxu0 0
    %203 = vmatpush1.bf16.msra.mxu0 %v152
    %204 = vmatprep.subr.bf16.mxu0 0
    %205 = vmatpush1.bf16.msra.mxu0 %v151
    %206 = vmatprep.subr.bf16.mxu0 0
    %207 = vmatpush1.bf16.msra.mxu0 %v150
    %208 = vmatprep.subr.bf16.mxu0 0
    %209 = vmatpush1.bf16.msra.mxu0 %v149
    %210 = vmatprep.subr.bf16.mxu0 0
    %211 = vmatpush1.bf16.msra.mxu0 %v148
    %212 = vmatprep.subr.bf16.mxu0 0
    %213 = vmatpush2.bf16.msra.mxu0 %v163
    %214 = vmatprep.subr.bf16.mxu0 0
    %215 = vmatpush2.bf16.msra.mxu0 %v162
    %216 = vmatprep.subr.bf16.mxu0 0
    %217 = vmatpush2.bf16.msra.mxu0 %v161
    %218 = vmatprep.subr.bf16.mxu0 0
    %219 = vmatpush2.bf16.msra.mxu0 %v160
    %220 = vmatprep.subr.bf16.mxu0 0
    %221 = vmatpush2.bf16.msra.mxu0 %v159
    %222 = vmatprep.subr.bf16.mxu0 0
    %223 = vmatpush2.bf16.msra.mxu0 %v158
    %224 = vmatprep.subr.bf16.mxu0 0
    %225 = vmatpush2.bf16.msra.mxu0 %v157
    %226 = vmatprep.subr.bf16.mxu0 0
    %227 = vmatpush2.bf16.msra.mxu0 %v156
    %228 = vmatprep.mubr.bf16.mxu0 %v29
    %229 = vmatmul.mubr.bf16.gmra.mxu0 %v28
    %v230 = vpop.f32.mrf.mxu0
    %v231 = vadd.f32 0.0, %v230
    %v232 = vpop.f32.mrf.mxu0
    %v233 = vpop.f32.mrf.mxu0
    %v234 = vadd.f32 0.0, %v233
    %v235 = vpop.f32.mrf.mxu0
    %236 = vmatprep.mubr.bf16.mxu0 %v32
    %237 = vmatmul.mubr.bf16.gmra.mxu0 %v31
    %v238 = vpop.f32.mrf.mxu0
    %v239 = vadd.f32 0.0, %v238
    %v240 = vpop.f32.mrf.mxu0
    %v241 = vpop.f32.mrf.mxu0
    %v242 = vadd.f32 0.0, %v241
    %v243 = vpop.f32.mrf.mxu0
    %244 = vdwg.mxu0
    %245 = vmatprep.subr.bf16.mxu0 0
    %246 = vmatpush1.bf16.msra.mxu0 0
    %247 = vmatprep.subr.bf16.mxu0 0
    %248 = vmatpush1.bf16.msra.mxu0 0
    %249 = vmatprep.subr.bf16.mxu0 0
    %250 = vmatpush1.bf16.msra.mxu0 0
    %251 = vmatprep.subr.bf16.mxu0 0
    %252 = vmatpush1.bf16.msra.mxu0 0
    %253 = vmatprep.subr.bf16.mxu0 0
    %254 = vmatpush1.bf16.msra.mxu0 0
    %255 = vmatprep.subr.bf16.mxu0 0
    %256 = vmatpush1.bf16.msra.mxu0 %v194
    %257 = vmatprep.subr.bf16.mxu0 0
    %258 = vmatpush1.bf16.msra.mxu0 %v165
    %259 = vmatprep.subr.bf16.mxu0 0
    %260 = vmatpush1.bf16.msra.mxu0 %v164
    %261 = vmatprep.subr.bf16.mxu0 0
    %262 = vmatpush2.bf16.msra.mxu0 0
    %263 = vmatprep.subr.bf16.mxu0 0
    %264 = vmatpush2.bf16.msra.mxu0 0
    %265 = vmatprep.subr.bf16.mxu0 0
    %266 = vmatpush2.bf16.msra.mxu0 0
    %267 = vmatprep.subr.bf16.mxu0 0
    %268 = vmatpush2.bf16.msra.mxu0 0
    %269 = vmatprep.subr.bf16.mxu0 0
    %270 = vmatpush2.bf16.msra.mxu0 0
    %271 = vmatprep.subr.bf16.mxu0 0
    %272 = vmatpush2.bf16.msra.mxu0 0
    %273 = vmatprep.subr.bf16.mxu0 0
    %274 = vmatpush2.bf16.msra.mxu0 0
    %275 = vmatprep.subr.bf16.mxu0 0
    %276 = vmatpush2.bf16.msra.mxu0 0
    %277 = vmatprep.mubr.bf16.mxu0 0
    %278 = vmatmul.mubr.bf16.gmra.mxu0 %v187
    %v279 = vpop.f32.mrf.mxu0
    %v280 = vadd.f32 %v231, %v279
    %v281 = vpop.f32.mrf.mxu0
    %v282 = vpop.f32.mrf.mxu0
    %v283 = vadd.f32 %v234, %v282
    %v284 = vpop.f32.mrf.mxu0
    %285 = vmatprep.mubr.bf16.mxu0 0
    %286 = vmatmul.mubr.bf16.gmra.mxu0 %v190
    %v287 = vpop.f32.mrf.mxu0
    %v288 = vadd.f32 %v239, %v287
    %v289 = vpop.f32.mrf.mxu0
    %v290 = vpop.f32.mrf.mxu0
    %v291 = vadd.f32 %v242, %v290
    %v292 = vpop.f32.mrf.mxu0
    %293 = vdwg.mxu0
    %v294 = vld [vmem:[%s2] sm:$0x1]
    %v295 = vadd.f32 %v280, 0.0
    %v296 = vadd.f32 %v283, 0.0
    %v297 = vadd.f32 %v288, 0.0
    %v298 = vadd.f32 %v291, 0.0
    %vm303 = vcmask 1046528
    %v304 = vrot.slane %v280, 1
    %v305 = vrot.slane %v283, 1
    %v306 = vsel %vm303, %v304, %v305
    %v307 = vrot.slane %v288, 1
    %v308 = vrot.slane %v291, 1
    %v309 = vsel %vm303, %v307, %v308
    %310 = vrot.lane.b32.xlu0 %v306, 120
    %v311 = vpop.permute.xlu0 %310
    %312 = vrot.lane.b32.xlu0 %v305, 120
    %v313 = vpop.permute.xlu0 %312
    %314 = vrot.lane.b32.xlu0 %v309, 120
    %v315 = vpop.permute.xlu0 %314
    %316 = vrot.lane.b32.xlu0 %v308, 120
    %v317 = vpop.permute.xlu0 %316
    %v322 = vadd.f32 %v295, %v311
    %v323 = vadd.f32 %v296, %v313
    %v324 = vadd.f32 %v297, %v315
    %v325 = vadd.f32 %v298, %v317
    %v326 = vrot.slane %v280, 2
    %v327 = vrot.slane %v283, 2
    %v328 = vsel %vm192, %v326, %v327
    %v329 = vrot.slane %v288, 2
    %v330 = vrot.slane %v291, 2
    %v331 = vsel %vm192, %v329, %v330
    %332 = vrot.lane.b32.xlu0 %v328, 112
    %v333 = vpop.permute.xlu0 %332
    %334 = vrot.lane.b32.xlu0 %v327, 112
    %v335 = vpop.permute.xlu0 %334
    %336 = vrot.lane.b32.xlu0 %v331, 112
    %v337 = vpop.permute.xlu0 %336
    %338 = vrot.lane.b32.xlu0 %v330, 112
    %v339 = vpop.permute.xlu0 %338
    %v344 = vadd.f32 %v322, %v333
    %v345 = vadd.f32 %v323, %v335
    %v346 = vadd.f32 %v324, %v337
    %v347 = vadd.f32 %v325, %v339
    %v349 = vlaneseq
    %v350 = vshrl.u32 %v349, 7
    %v351 = vsub.s32 0, %v350
    %v352 = vrot.slane %v294, %v351
    %v354 = vadd.f32 %v344, %v352
    %v355 = vadd.f32 %v345, %v352
    %v356 = vadd.f32 %v346, %v352
    %v357 = vadd.f32 %v347, %v352
    %v358 = vmax.f32 %v354, 0.0
    %v359 = vmax.f32 %v355, 0.0
    %v360 = vmax.f32 %v356, 0.0
    %v361 = vmax.f32 %v357, 0.0
    %vm362 = vcmask 64512
    %v363 = vsel %vm362, %v358, -inf
    %vm364 = vcmask 62464
    %v365 = vsel %vm364, %v359, -inf
    %v366 = vmax.f32 %v363, %v365
    %v367 = vrot.slane %v366, 4
    %v368 = vmax.f32 %v366, %v367
    %v369 = vrot.slane %v368, 2
    %v370 = vmax.f32 %v368, %v369
    %v371 = vrot.slane %v370, 1
    %v372 = vmax.f32 %v370, %v371
    %v373 = vsel %vm362, %v360, -inf
    %v374 = vsel %vm364, %v361, -inf
    %v375 = vmax.f32 %v373, %v374
    %v376 = vrot.slane %v375, 4
    %v377 = vmax.f32 %v375, %v376
    %v378 = vrot.slane %v377, 2
    %v379 = vmax.f32 %v377, %v378
    %v380 = vrot.slane %v379, 1
    %v381 = vmax.f32 %v379, %v380
    %vm382 = vcmask 1044480
    %v383 = vrot.slane %v280, 3
    %v384 = vrot.slane %v283, 3
    %v385 = vsel %vm382, %v383, %v384
    %v386 = vrot.slane %v288, 3
    %v387 = vrot.slane %v291, 3
    %v388 = vsel %vm382, %v386, %v387
    %389 = vrot.lane.b32.xlu0 %v385, 104
    %v390 = vpop.permute.xlu0 %389
    %391 = vrot.lane.b32.xlu0 %v384, 104
    %v392 = vpop.permute.xlu0 %391
    %393 = vrot.lane.b32.xlu0 %v388, 104
    %v394 = vpop.permute.xlu0 %393
    %395 = vrot.lane.b32.xlu0 %v387, 104
    %v396 = vpop.permute.xlu0 %395
    %v401 = vadd.f32 %v344, %v390
    %v402 = vadd.f32 %v345, %v392
    %v403 = vadd.f32 %v346, %v394
    %v404 = vadd.f32 %v347, %v396
    %405 = vrot.lane.b32.xlu0 %v352, 16
    %v406 = vpop.permute.xlu0 %405
    %v408 = vadd.f32 %v401, %v406
    %v409 = vadd.f32 %v402, %v406
    %v410 = vadd.f32 %v403, %v406
    %v411 = vadd.f32 %v404, %v406
    %v412 = vmax.f32 %v408, 0.0
    %v413 = vmax.f32 %v409, 0.0
    %v414 = vmax.f32 %v410, 0.0
    %v415 = vmax.f32 %v411, 0.0
    %vm416 = vcmask 261312
    %v417 = vsel %vm416, %v412, -inf
    %vm418 = vcmask 258240
    %v419 = vsel %vm418, %v413, -inf
    %v420 = vmax.f32 %v417, %v419
    %v421 = vrot.slane %v420, 4
    %v422 = vmax.f32 %v420, %v421
    %v423 = vrot.slane %v422, 2
    %v424 = vmax.f32 %v422, %v423
    %v425 = vrot.slane %v424, 1
    %v426 = vmax.f32 %v424, %v425
    %v427 = vsel %vm416, %v414, -inf
    %v428 = vsel %vm418, %v415, -inf
    %v429 = vmax.f32 %v427, %v428
    %v430 = vrot.slane %v429, 4
    %v431 = vmax.f32 %v429, %v430
    %v432 = vrot.slane %v431, 2
    %v433 = vmax.f32 %v431, %v432
    %v434 = vrot.slane %v433, 1
    %v435 = vmax.f32 %v433, %v434
    %vm436 = vcmask 1043456
    %v437 = vrot.slane %v280, 4
    %v438 = vrot.slane %v283, 4
    %v439 = vsel %vm436, %v437, %v438
    %v440 = vrot.slane %v288, 4
    %v441 = vrot.slane %v291, 4
    %v442 = vsel %vm436, %v440, %v441
    %443 = vrot.lane.b32.xlu0 %v439, 96
    %v444 = vpop.permute.xlu0 %443
    %445 = vrot.lane.b32.xlu0 %v438, 96
    %v446 = vpop.permute.xlu0 %445
    %447 = vrot.lane.b32.xlu0 %v442, 96
    %v448 = vpop.permute.xlu0 %447
    %449 = vrot.lane.b32.xlu0 %v441, 96
    %v450 = vpop.permute.xlu0 %449
    %v455 = vadd.f32 %v401, %v444
    %v456 = vadd.f32 %v402, %v446
    %v457 = vadd.f32 %v403, %v448
    %v458 = vadd.f32 %v404, %v450
    %459 = vrot.lane.b32.xlu0 %v352, 40
    %v460 = vpop.permute.xlu0 %459
    %v462 = vadd.f32 %v455, %v460
    %v463 = vadd.f32 %v456, %v460
    %v464 = vadd.f32 %v457, %v460
    %v465 = vadd.f32 %v458, %v460
    %v466 = vmax.f32 %v462, 0.0
    %v467 = vmax.f32 %v463, 0.0
    %v468 = vmax.f32 %v464, 0.0
    %v469 = vmax.f32 %v465, 0.0
    %vm470 = vcmask 523712
    %v471 = vsel %vm470, %v466, -inf
    %vm472 = vcmask 519616
    %v473 = vsel %vm472, %v467, -inf
    %v474 = vmax.f32 %v471, %v473
    %v475 = vrot.slane %v474, 4
    %v476 = vmax.f32 %v474, %v475
    %v477 = vrot.slane %v476, 2
    %v478 = vmax.f32 %v476, %v477
    %v479 = vrot.slane %v478, 1
    %v480 = vmax.f32 %v478, %v479
    %v481 = vsel %vm470, %v468, -inf
    %v482 = vsel %vm472, %v469, -inf
    %v483 = vmax.f32 %v481, %v482
    %v484 = vrot.slane %v483, 4
    %v485 = vmax.f32 %v483, %v484
    %v486 = vrot.slane %v485, 2
    %v487 = vmax.f32 %v485, %v486
    %v488 = vrot.slane %v487, 1
    %v489 = vmax.f32 %v487, %v488
    %vm492 = vcmask 1041409
    %v493 = vsel %vm492, %v381, %v372
    %v497 = vsel %vm492, %v435, %v426
    %498 = vrot.lane.b32.xlu0 %v497, 112
    %v499 = vpop.permute.xlu0 %498
    %v503 = vsel %vm492, %v489, %v480
    %504 = vrot.lane.b32.xlu0 %v503, 88
    %v505 = vpop.permute.xlu0 %504
    %v507 = vsel %vm362, %v493, %v499
    %vm508 = vcmask 130048
    %v509 = vsel %vm508, %v507, %v505
    %vm510 = vcmask 189440
    %511 = vst.msk [vmem:[#allocation2] sm:$0x3] %vm510, %v509
    // Predicated region
    $region14: #{tpu_custom_call.1} parent=1 // pred_check
      _
    $region15: #{tpu_custom_call.1} parent=1 // pred_check_branch
      %513 = sbr.rel (0) target = $region17
    $region16: #{tpu_custom_call.1} parent=1 // pred_region
      %s515 = ssub.s32 32, 32
      %516 = vsyncadd [#allocation3], %s515
      %s518 = sshll.u32 [#allocation2], 4
      %s519 = int_to_ptr.vmem [resolvable:$true] %s518
      %521 = dma.vmem_to_hbm [thread:$0]  %s519, 32, %s3, [#allocation3]
    $region17: #{tpu_custom_call.1} parent=1 // pred_fallthru
      _
    // Predicated region
    $region18: #{tpu_custom_call.1} parent=1 // pred_check
      _
    $region19: #{tpu_custom_call.1} parent=1 // pred_check_branch
      %523 = sbr.rel (0) target = $region21
    $region20: #{tpu_custom_call.1} parent=1 // pred_region
      %524 = dma.done [#allocation3], 32
    $region21: #{tpu_custom_call.1} parent=1 // pred_fallthru
      _
    %525 = vsyncpa [#allocation3], 1

</llo_original>
